<compile_context>
chip_gen: v5e
topology: v5e:2x2
jax: 0.10.0
libtpu: 0.0.40
codegen_flags: <defaults>
</compile_context>

<pallas_src>
import functools

import jax
import jax.numpy as jnp
from jax.experimental import pallas as pl
from jax.experimental.pallas import tpu as pltpu


_INV_SQRT2 = 0.7071067811865475
_LN_EPS = 1e-5  # torch.nn.LayerNorm default eps


def _activation(x, act):
    if act == "gelu":
        # Exact (erf-based) GELU, matching torch.nn.GELU() default.
        return 0.5 * x * (1.0 + jax.lax.erf(x * _INV_SQRT2))
    if act == "relu":
        return jnp.maximum(x, 0.0)
    if act == "mish":
        return x * jnp.tanh(jax.nn.softplus(x))
    if act == "tanh":
        return jnp.tanh(x)
    raise NotImplementedError(act)


def _layernorm(x):
    # LayerNorm over the last dim, elementwise_affine=False.
    # TODO(synk): elementwise_affine=True (learnable gamma/beta) is not plumbed;
    #             the module default is affine=False.
    mu = jnp.mean(x, axis=-1, keepdims=True)
    xc = x - mu
    var = jnp.mean(xc * xc, axis=-1, keepdims=True)
    return xc * jax.lax.rsqrt(var + _LN_EPS)


def _make_mlp_kernel(num_layers, add_bias, apply_layernorm, act):
    """Builds a kernel for one batch tile; all layers fused in VMEM/vregs."""

    def kernel(*refs):
        x_ref = refs[0]
        out_ref = refs[-1]
        p = refs[1:-1]

        # Gather weight refs; hoist bias loads once per grid step.
        w_refs, biases = [], []
        idx = 0
        for _ in range(num_layers):
            w_refs.append(p[idx])
            idx += 1
            if add_bias:
                biases.append(p[idx][...].astype(jnp.float32))
                idx += 1

        h = x_ref[...]  # bf16 tile
        for i in range(num_layers):
            w = w_refs[i][...]  # bf16, VMEM-resident
            z = jnp.dot(h.astype(w.dtype), w, preferred_element_type=jnp.float32)
            if add_bias:
                z = z + biases[i]
            if i < num_layers - 1:
                if apply_layernorm:
                    z = _layernorm(z)
                z = _activation(z, act)
            h = z
        out_ref[...] = h.astype(out_ref.dtype)

    return kernel


def _round_up(n, m):
    return ((n + m - 1) // m) * m


@functools.partial(
    jax.jit, static_argnames=("add_bias", "act", "apply_layernorm", "block_b")
)
def mlp_forward(x, weights, biases, *, add_bias=True, act="gelu",
                apply_layernorm=False, block_b=512):
    """Pallas-backed MLP forward.

    x:       (B, dims[0]) float32
    weights: tuple of (dims[i], dims[i+1]) float32
    biases:  tuple of (dims[i+1],) float32 (ignored if add_bias=False)
    block_b: batch tile rows (multiple of 8). 512 is a good default on
             v5e/v6e/v7x for this footprint (weights resident + ~1 KB/row tiles).
    """
    B, d0 = x.shape
    num_layers = len(weights)
    out_dim = weights[-1].shape[1]

    # bf16 matmul operands (f32 accumulation inside the kernel).
    x_bf = x.astype(jnp.bfloat16)
    w_bf = [w.astype(jnp.bfloat16) for w in weights]

    # Batch tiling; pad ragged batches with zero rows (sliced off afterwards;
    # LN/activation on zero rows stay finite, so padding is harmless).
    tb = min(block_b, _round_up(B, 8))
    b_pad = _round_up(B, tb)
    if b_pad != B:
        x_bf = jnp.pad(x_bf, ((0, b_pad - B), (0, 0)))

    args = [x_bf]
    in_specs = [pl.BlockSpec((tb, d0), lambda i: (i, 0))]
    for li in range(num_layers):
        args.append(w_bf[li])
        in_specs.append(pl.BlockSpec(w_bf[li].shape, lambda i: (0, 0)))
        if add_bias:
            b2 = biases[li].reshape(1, -1).astype(jnp.float32)
            args.append(b2)
            in_specs.append(pl.BlockSpec(b2.shape, lambda i: (0, 0)))

    kernel = _make_mlp_kernel(num_layers, add_bias, apply_layernorm, act)

    out = pl.pallas_call(
        kernel,
        grid=(b_pad // tb,),
        in_specs=in_specs,
        out_specs=pl.BlockSpec((tb, out_dim), lambda i: (i, 0)),
        out_shape=jax.ShapeDtypeStruct((b_pad, out_dim), jnp.float32),
        compiler_params=pltpu.CompilerParams(
            dimension_semantics=("parallel",),          # shards batch across v7x TCs
            vmem_limit_bytes=32 * 1024 * 1024,          # safe on v5e/v6e/v7x
        ),
    )(*args)
    return out[:B]


def _reference_forward(x, weights, biases, add_bias, act, apply_layernorm):
    """Pure-JAX f32 reference mirroring the PyTorch MLP."""
    h = x
    n = len(weights)
    for i in range(n):
        h = h @ weights[i]
        if add_bias:
            h = h + biases[i]
        if i < n - 1:
            if apply_layernorm:
                mu = jnp.mean(h, axis=-1, keepdims=True)
                var = jnp.mean((h - mu) ** 2, axis=-1, keepdims=True)
                h = (h - mu) / jnp.sqrt(var + _LN_EPS)
            if act == "gelu":
                h = jax.nn.gelu(h, approximate=False)
            elif act == "relu":
                h = jax.nn.relu(h)
            elif act == "mish":
                h = h * jnp.tanh(jax.nn.softplus(h))
            elif act == "tanh":
                h = jnp.tanh(h)
    return h


if __name__ == "__main__":
    # Small config consistent with how the module is used in sparsenn:
    # MLP([324, 256, 128, 64], add_bias=True, act='gelu', apply_layernorm=True).
    dims = [324, 256, 128, 64]
    B = 16
    add_bias = True
    act = "gelu"
    apply_layernorm = True

    n_layers = len(dims) - 1
    key = jax.random.PRNGKey(0)
    keys = jax.random.split(key, 2 * n_layers + 1)
    scale = 0.05
    weights = tuple(
        scale * jax.random.normal(keys[2 * i], (dims[i], dims[i + 1]), jnp.float32)
        for i in range(n_layers)
    )
    biases = tuple(
        scale * jax.random.normal(keys[2 * i + 1], (dims[i + 1],), jnp.float32)
        for i in range(n_layers)
    )
    x = jax.random.normal(keys[-1], (B, dims[0]), jnp.float32)

    out = mlp_forward(x, weights, biases, add_bias=add_bias, act=act,
                      apply_layernorm=apply_layernorm, block_b=512)
    out = jax.block_until_ready(out)

    ref = _reference_forward(x, weights, biases, add_bias, act, apply_layernorm)
    assert out.shape == (B, dims[-1])
    # bf16 matmul operands with f32 accumulation -> loosened tolerance vs f32 ref.
    assert jnp.allclose(out, ref, atol=3e-2, rtol=3e-2), "mismatch vs JAX reference"

    print("KERNEL_OK")
</pallas_src>

<mosaic_0001>
module attributes {stable_mosaic.version = 11 : i64} {
  func.func @kernel(%arg0: i32, %arg1: memref<16x324xbf16, #tpu.memory_space<vmem>>, %arg2: memref<324x256xbf16, #tpu.memory_space<vmem>>, %arg3: memref<1x256xf32, #tpu.memory_space<vmem>>, %arg4: memref<256x128xbf16, #tpu.memory_space<vmem>>, %arg5: memref<1x128xf32, #tpu.memory_space<vmem>>, %arg6: memref<128x64xbf16, #tpu.memory_space<vmem>>, %arg7: memref<1x64xf32, #tpu.memory_space<vmem>>, %arg8: memref<16x64xf32, #tpu.memory_space<vmem>>) attributes {dimension_semantics = [#tpu.dimension_semantics<parallel>], iteration_bounds = array<i64: 1>, scalar_prefetch = 0 : i64, scratch_operands = 0 : i64, tpu.core_type = #tpu.core_type<tc>, window_params = [{transform_indices = @transform_0, window_bounds = array<i64: 16, 324>}, {pipeline_mode = #tpu.pipeline_mode<synchronous>, transform_indices = @transform_1, window_bounds = array<i64: 324, 256>}, {pipeline_mode = #tpu.pipeline_mode<synchronous>, transform_indices = @transform_2, window_bounds = array<i64: 1, 256>}, {pipeline_mode = #tpu.pipeline_mode<synchronous>, transform_indices = @transform_3, window_bounds = array<i64: 256, 128>}, {pipeline_mode = #tpu.pipeline_mode<synchronous>, transform_indices = @transform_4, window_bounds = array<i64: 1, 128>}, {pipeline_mode = #tpu.pipeline_mode<synchronous>, transform_indices = @transform_5, window_bounds = array<i64: 128, 64>}, {pipeline_mode = #tpu.pipeline_mode<synchronous>, transform_indices = @transform_6, window_bounds = array<i64: 1, 64>}, {transform_indices = @transform_7, window_bounds = array<i64: 16, 64>}]} {
    %c0 = arith.constant 0 : index
    %c0_0 = arith.constant 0 : index
    %0 = vector.load %arg3[%c0, %c0_0] : memref<1x256xf32, #tpu.memory_space<vmem>>, vector<1x256xf32>
    %c0_1 = arith.constant 0 : index
    %c0_2 = arith.constant 0 : index
    %1 = vector.load %arg5[%c0_1, %c0_2] : memref<1x128xf32, #tpu.memory_space<vmem>>, vector<1x128xf32>
    %c0_3 = arith.constant 0 : index
    %c0_4 = arith.constant 0 : index
    %2 = vector.load %arg7[%c0_3, %c0_4] : memref<1x64xf32, #tpu.memory_space<vmem>>, vector<1x64xf32>
    %c0_5 = arith.constant 0 : index
    %c0_6 = arith.constant 0 : index
    %3 = vector.load %arg1[%c0_5, %c0_6] : memref<16x324xbf16, #tpu.memory_space<vmem>>, vector<16x324xbf16>
    %c0_7 = arith.constant 0 : index
    %c0_8 = arith.constant 0 : index
    %4 = vector.load %arg2[%c0_7, %c0_8] : memref<324x256xbf16, #tpu.memory_space<vmem>>, vector<324x256xbf16>
    %cst = arith.constant dense<0.000000e+00> : vector<16x256xf32>
    %5 = tpu.matmul %3, %4, %cst {dimension_numbers = #tpu.dot_dimension_numbers<[1], [0], [0], [1], [0, 0, 1, 1], [], []>} : vector<16x324xbf16>, vector<324x256xbf16>, vector<16x256xf32> -> vector<16x256xf32>
    %6 = vector.broadcast %0 : vector<1x256xf32> to vector<16x256xf32>
    %7 = arith.addf %5, %6 : vector<16x256xf32>
    %cst_9 = arith.constant dense<0.000000e+00> : vector<16xf32>
    %8 = vector.multi_reduction <add>, %7, %cst_9 [1] : vector<16x256xf32> to vector<16xf32>
    %9 = vector.shape_cast %8 : vector<16xf32> to vector<16x1xf32>
    %cst_10 = arith.constant 2.560000e+02 : f32
    %10 = vector.broadcast %cst_10 : f32 to vector<16x1xf32>
    %11 = arith.divf %9, %10 : vector<16x1xf32>
    %12 = vector.broadcast %11 : vector<16x1xf32> to vector<16x256xf32>
    %13 = arith.subf %7, %12 : vector<16x256xf32>
    %14 = arith.mulf %13, %13 : vector<16x256xf32>
    %cst_11 = arith.constant dense<0.000000e+00> : vector<16xf32>
    %15 = vector.multi_reduction <add>, %14, %cst_11 [1] : vector<16x256xf32> to vector<16xf32>
    %16 = vector.shape_cast %15 : vector<16xf32> to vector<16x1xf32>
    %cst_12 = arith.constant 2.560000e+02 : f32
    %17 = vector.broadcast %cst_12 : f32 to vector<16x1xf32>
    %18 = arith.divf %16, %17 : vector<16x1xf32>
    %cst_13 = arith.constant 9.99999974E-6 : f32
    %19 = vector.broadcast %cst_13 : f32 to vector<16x1xf32>
    %20 = arith.addf %18, %19 : vector<16x1xf32>
    %21 = math.rsqrt %20 : vector<16x1xf32>
    %22 = vector.broadcast %21 : vector<16x1xf32> to vector<16x256xf32>
    %23 = arith.mulf %13, %22 : vector<16x256xf32>
    %cst_14 = arith.constant 5.000000e-01 : f32
    %24 = vector.broadcast %cst_14 : f32 to vector<16x256xf32>
    %25 = arith.mulf %24, %23 : vector<16x256xf32>
    %cst_15 = arith.constant 0.707106769 : f32
    %26 = vector.broadcast %cst_15 : f32 to vector<16x256xf32>
    %27 = arith.mulf %23, %26 : vector<16x256xf32>
    %28 = math.erf %27 : vector<16x256xf32>
    %cst_16 = arith.constant 1.000000e+00 : f32
    %29 = vector.broadcast %cst_16 : f32 to vector<16x256xf32>
    %30 = arith.addf %29, %28 : vector<16x256xf32>
    %31 = arith.mulf %25, %30 : vector<16x256xf32>
    %c0_17 = arith.constant 0 : index
    %c0_18 = arith.constant 0 : index
    %32 = vector.load %arg4[%c0_17, %c0_18] : memref<256x128xbf16, #tpu.memory_space<vmem>>, vector<256x128xbf16>
    %33 = arith.truncf %31 : vector<16x256xf32> to vector<16x256xbf16>
    %cst_19 = arith.constant dense<0.000000e+00> : vector<16x128xf32>
    %34 = tpu.matmul %33, %32, %cst_19 {dimension_numbers = #tpu.dot_dimension_numbers<[1], [0], [0], [1], [0, 0, 1, 1], [], []>} : vector<16x256xbf16>, vector<256x128xbf16>, vector<16x128xf32> -> vector<16x128xf32>
    %35 = vector.broadcast %1 : vector<1x128xf32> to vector<16x128xf32>
    %36 = arith.addf %34, %35 : vector<16x128xf32>
    %cst_20 = arith.constant dense<0.000000e+00> : vector<16xf32>
    %37 = vector.multi_reduction <add>, %36, %cst_20 [1] : vector<16x128xf32> to vector<16xf32>
    %38 = vector.shape_cast %37 : vector<16xf32> to vector<16x1xf32>
    %cst_21 = arith.constant 1.280000e+02 : f32
    %39 = vector.broadcast %cst_21 : f32 to vector<16x1xf32>
    %40 = arith.divf %38, %39 : vector<16x1xf32>
    %41 = vector.broadcast %40 : vector<16x1xf32> to vector<16x128xf32>
    %42 = arith.subf %36, %41 : vector<16x128xf32>
    %43 = arith.mulf %42, %42 : vector<16x128xf32>
    %cst_22 = arith.constant dense<0.000000e+00> : vector<16xf32>
    %44 = vector.multi_reduction <add>, %43, %cst_22 [1] : vector<16x128xf32> to vector<16xf32>
    %45 = vector.shape_cast %44 : vector<16xf32> to vector<16x1xf32>
    %cst_23 = arith.constant 1.280000e+02 : f32
    %46 = vector.broadcast %cst_23 : f32 to vector<16x1xf32>
    %47 = arith.divf %45, %46 : vector<16x1xf32>
    %cst_24 = arith.constant 9.99999974E-6 : f32
    %48 = vector.broadcast %cst_24 : f32 to vector<16x1xf32>
    %49 = arith.addf %47, %48 : vector<16x1xf32>
    %50 = math.rsqrt %49 : vector<16x1xf32>
    %51 = vector.broadcast %50 : vector<16x1xf32> to vector<16x128xf32>
    %52 = arith.mulf %42, %51 : vector<16x128xf32>
    %cst_25 = arith.constant 5.000000e-01 : f32
    %53 = vector.broadcast %cst_25 : f32 to vector<16x128xf32>
    %54 = arith.mulf %53, %52 : vector<16x128xf32>
    %cst_26 = arith.constant 0.707106769 : f32
    %55 = vector.broadcast %cst_26 : f32 to vector<16x128xf32>
    %56 = arith.mulf %52, %55 : vector<16x128xf32>
    %57 = math.erf %56 : vector<16x128xf32>
    %cst_27 = arith.constant 1.000000e+00 : f32
    %58 = vector.broadcast %cst_27 : f32 to vector<16x128xf32>
    %59 = arith.addf %58, %57 : vector<16x128xf32>
    %60 = arith.mulf %54, %59 : vector<16x128xf32>
    %c0_28 = arith.constant 0 : index
    %c0_29 = arith.constant 0 : index
    %61 = vector.load %arg6[%c0_28, %c0_29] : memref<128x64xbf16, #tpu.memory_space<vmem>>, vector<128x64xbf16>
    %62 = arith.truncf %60 : vector<16x128xf32> to vector<16x128xbf16>
    %cst_30 = arith.constant dense<0.000000e+00> : vector<16x64xf32>
    %63 = tpu.matmul %62, %61, %cst_30 {dimension_numbers = #tpu.dot_dimension_numbers<[1], [0], [0], [1], [0, 0, 1, 1], [], []>} : vector<16x128xbf16>, vector<128x64xbf16>, vector<16x64xf32> -> vector<16x64xf32>
    %64 = vector.broadcast %2 : vector<1x64xf32> to vector<16x64xf32>
    %65 = arith.addf %63, %64 : vector<16x64xf32>
    %c0_31 = arith.constant 0 : index
    %c0_32 = arith.constant 0 : index
    %66 = vector.load %arg8[%c0_31, %c0_32] : memref<16x64xf32, #tpu.memory_space<vmem>>, vector<16x64xf32>
    tpu.vector_store %arg8[%c0_31, %c0_32], %65 {strides = array<i32>} : memref<16x64xf32, #tpu.memory_space<vmem>>, vector<16x64xf32>,
    return
  }
  func.func @transform_0(%arg0: i32) -> (i32, i32) {
    %c0_i32 = arith.constant 0 : i32
    %c0_i32_0 = arith.constant 0 : i32
    return %arg0, %c0_i32 : i32, i32
  }
  func.func @transform_1(%arg0: i32) -> (i32, i32) {
    %c0_i32 = arith.constant 0 : i32
    %c0_i32_0 = arith.constant 0 : i32
    %c0_i32_1 = arith.constant 0 : i32
    return %c0_i32, %c0_i32_0 : i32, i32
  }
  func.func @transform_2(%arg0: i32) -> (i32, i32) {
    %c0_i32 = arith.constant 0 : i32
    %c0_i32_0 = arith.constant 0 : i32
    %c0_i32_1 = arith.constant 0 : i32
    return %c0_i32, %c0_i32_0 : i32, i32
  }
  func.func @transform_3(%arg0: i32) -> (i32, i32) {
    %c0_i32 = arith.constant 0 : i32
    %c0_i32_0 = arith.constant 0 : i32
    %c0_i32_1 = arith.constant 0 : i32
    return %c0_i32, %c0_i32_0 : i32, i32
  }
  func.func @transform_4(%arg0: i32) -> (i32, i32) {
    %c0_i32 = arith.constant 0 : i32
    %c0_i32_0 = arith.constant 0 : i32
    %c0_i32_1 = arith.constant 0 : i32
    return %c0_i32, %c0_i32_0 : i32, i32
  }
  func.func @transform_5(%arg0: i32) -> (i32, i32) {
    %c0_i32 = arith.constant 0 : i32
    %c0_i32_0 = arith.constant 0 : i32
    %c0_i32_1 = arith.constant 0 : i32
    return %c0_i32, %c0_i32_0 : i32, i32
  }
  func.func @transform_6(%arg0: i32) -> (i32, i32) {
    %c0_i32 = arith.constant 0 : i32
    %c0_i32_0 = arith.constant 0 : i32
    %c0_i32_1 = arith.constant 0 : i32
    return %c0_i32, %c0_i32_0 : i32, i32
  }
  func.func @transform_7(%arg0: i32) -> (i32, i32) {
    %c0_i32 = arith.constant 0 : i32
    %c0_i32_0 = arith.constant 0 : i32
    return %arg0, %c0_i32 : i32, i32
  }
}

</mosaic_0001>

<llo_original>
// kernel: mlp_forward.1
$region0: #{mlp_forward.1}
  #allocation0 [shape = 'u32[]', space=smem, size = 0x4, offset = 0x4, fixed_abs, tag = 'smem constant byte address 0x4 - core index']
  #allocation1 [shape = 'u32[72,128]{1,0:T(1,128)}', space=vmem, size = 0x9000, scoped, tag = 'internal scratch']
  %s0 = inlined_call_operand.vmem [shape: bf16[16,324], index: 0, kind: input, shape index: {}]
  %s1 = inlined_call_operand.vmem [shape: bf16[324,256], index: 1, kind: input, shape index: {}]
  %s2 = inlined_call_operand.vmem [shape: f32[1,256], index: 2, kind: input, shape index: {}]
  %s3 = inlined_call_operand.vmem [shape: bf16[256,128], index: 3, kind: input, shape index: {}]
  %s4 = inlined_call_operand.vmem [shape: f32[1,128], index: 4, kind: input, shape index: {}]
  %s5 = inlined_call_operand.vmem [shape: bf16[128,64], index: 5, kind: input, shape index: {}]
  %s6 = inlined_call_operand.vmem [shape: f32[1,64], index: 6, kind: input, shape index: {}]
  %s7 = inlined_call_operand.hbm [shape: f32[16,64], index: 7, kind: output, shape index: {}]
  %s8 = sld [smem:[#allocation0]]
  $region38: #{mlp_forward.1} parent=0
    _
  %s10 = ssub.s32 1, %s8
  %s11 = scalar_select 0, %s10, %s8
  $region1: #{mlp_forward.1} parent=0
    #allocation2 [shape = 'u8[8192]{0}', space=vmem, size = 0x2000, scoped, tag = 'output window, operand 0, single buffered']
    #allocation3 [shape = 's32[1]{0}', space=sflag, size = 0x4, scoped, tag = 'scoped memory for mlp_forward.1']
    %12 = vsyncpa [#allocation3], 0
    // Predicated region
    $region2: #{mlp_forward.1} parent=1 // pred_check
      _
    $region3: #{mlp_forward.1} parent=1 // pred_check_branch
      %14 = sbr.rel (0) target = $region5
    $region4: #{mlp_forward.1} parent=1 // pred_region
      _
    $region5: #{mlp_forward.1} parent=1 // pred_fallthru
      _
    // Predicated region
    $region6: #{mlp_forward.1} parent=1 // pred_check
      _
    $region7: #{mlp_forward.1} parent=1 // pred_check_branch
      %16 = sbr.rel (0) target = $region9
    $region8: #{mlp_forward.1} parent=1 // pred_region
      _
    $region9: #{mlp_forward.1} parent=1 // pred_fallthru
      _
    // Predicated region
    $region10: #{mlp_forward.1} parent=1 // pred_check
      _
    $region11: #{mlp_forward.1} parent=1 // pred_check_branch
      %18 = sbr.rel (0) target = $region13
    $region12: #{mlp_forward.1} parent=1 // pred_region
      _
    $region13: #{mlp_forward.1} parent=1 // pred_fallthru
      _
    // Predicated region
    $region14: #{mlp_forward.1} parent=1 // pred_check
      _
    $region15: #{mlp_forward.1} parent=1 // pred_check_branch
      %20 = sbr.rel (0) target = $region17
    $region16: #{mlp_forward.1} parent=1 // pred_region
      _
    $region17: #{mlp_forward.1} parent=1 // pred_fallthru
      _
    // Predicated region
    $region18: #{mlp_forward.1} parent=1 // pred_check
      _
    $region19: #{mlp_forward.1} parent=1 // pred_check_branch
      %22 = sbr.rel (0) target = $region21
    $region20: #{mlp_forward.1} parent=1 // pred_region
      _
    $region21: #{mlp_forward.1} parent=1 // pred_fallthru
      _
    // Predicated region
    $region22: #{mlp_forward.1} parent=1 // pred_check
      _
    $region23: #{mlp_forward.1} parent=1 // pred_check_branch
      %24 = sbr.rel (0) target = $region25
    $region24: #{mlp_forward.1} parent=1 // pred_region
      _
    $region25: #{mlp_forward.1} parent=1 // pred_fallthru
      _
    // Predicated region
    $region26: #{mlp_forward.1} parent=1 // pred_check
      _
    $region27: #{mlp_forward.1} parent=1 // pred_check_branch
      %26 = sbr.rel (0) target = $region29
    $region28: #{mlp_forward.1} parent=1 // pred_region
      _
    $region29: #{mlp_forward.1} parent=1 // pred_fallthru
      _
    %v28 = vld [vmem:[%s2] sm:$0x3]
    %v29 = vld [vmem:[%s4] sm:$0x1]
    %v30 = vld [vmem:[%s6] sm:$0x1]
    %v31 = vld [vmem:[%s0] sm:$0xff]
    %v32 = vld [vmem:[%s0 + $0x8] sm:$0xf]
    %v33 = vld [vmem:[%s0 + $0xc] sm:$0xff]
    %v34 = vld [vmem:[%s0 + $0x14] sm:$0xf]
    %v35 = vld [vmem:[%s1] sm:$0xff]
    %v36 = vld [vmem:[%s1 + $0x8] sm:$0xff]
    %v37 = vld [vmem:[%s1 + $0x10] sm:$0xff]
    %v38 = vld [vmem:[%s1 + $0x18] sm:$0xff]
    %v39 = vld [vmem:[%s1 + $0x20] sm:$0xff]
    %v40 = vld [vmem:[%s1 + $0x28] sm:$0xff]
    %v41 = vld [vmem:[%s1 + $0x30] sm:$0xff]
    %v42 = vld [vmem:[%s1 + $0x38] sm:$0xff]
    %v43 = vld [vmem:[%s1 + $0x40] sm:$0xff]
    %v44 = vld [vmem:[%s1 + $0x48] sm:$0xff]
    %v45 = vld [vmem:[%s1 + $0x50] sm:$0xff]
    %v46 = vld [vmem:[%s1 + $0x58] sm:$0xff]
    %v47 = vld [vmem:[%s1 + $0x60] sm:$0xff]
    %v48 = vld [vmem:[%s1 + $0x68] sm:$0xff]
    %v49 = vld [vmem:[%s1 + $0x70] sm:$0xff]
    %v50 = vld [vmem:[%s1 + $0x78] sm:$0xff]
    %v51 = vld [vmem:[%s1 + $0x80] sm:$0xff]
    %v52 = vld [vmem:[%s1 + $0x88] sm:$0xff]
    %v53 = vld [vmem:[%s1 + $0x90] sm:$0xff]
    %v54 = vld [vmem:[%s1 + $0x98] sm:$0xff]
    %v55 = vld [vmem:[%s1 + $0xa0] sm:$0xff]
    %v56 = vld [vmem:[%s1 + $0xa8] sm:$0xff]
    %v57 = vld [vmem:[%s1 + $0xb0] sm:$0xff]
    %v58 = vld [vmem:[%s1 + $0xb8] sm:$0xff]
    %v59 = vld [vmem:[%s1 + $0xc0] sm:$0xff]
    %v60 = vld [vmem:[%s1 + $0xc8] sm:$0xff]
    %v61 = vld [vmem:[%s1 + $0xd0] sm:$0xff]
    %v62 = vld [vmem:[%s1 + $0xd8] sm:$0xff]
    %v63 = vld [vmem:[%s1 + $0xe0] sm:$0xff]
    %v64 = vld [vmem:[%s1 + $0xe8] sm:$0xff]
    %v65 = vld [vmem:[%s1 + $0xf0] sm:$0xff]
    %v66 = vld [vmem:[%s1 + $0xf8] sm:$0xff]
    %v67 = vld [vmem:[%s1 + $0x100] sm:$0xff]
    %v68 = vld [vmem:[%s1 + $0x108] sm:$0xff]
    %v69 = vld [vmem:[%s1 + $0x110] sm:$0xff]
    %v70 = vld [vmem:[%s1 + $0x118] sm:$0xff]
    %v71 = vld [vmem:[%s1 + $0x120] sm:$0xff]
    %v72 = vld [vmem:[%s1 + $0x128] sm:$0xff]
    %v73 = vld [vmem:[%s1 + $0x130] sm:$0xff]
    %v74 = vld [vmem:[%s1 + $0x138] sm:$0xff]
    %v75 = vld [vmem:[%s1 + $0x140] sm:$0x33]
    %v77 = vperm.slane %v28, 0
    %v78 = vperm.slane %v28, 1
    %v85 = vunpack.c.l.b16 %v31
    %v86 = vunpack.c.h.b16 %v31
    %v87 = vunpack.c.l.b16 %v32
    %v88 = vunpack.c.l.b16 %v33
    %v89 = vunpack.c.h.b16 %v33
    %v90 = vunpack.c.l.b16 %v34
    %v91 = vpack.c.b16 %v88, %v85
    %v92 = vpack.c.b16 %v89, %v86
    %v93 = vpack.c.b16 %v90, %v87
    %v137 = vunpack.c.l.b16 %v35
    %v138 = vunpack.c.h.b16 %v35
    %v139 = vunpack.c.l.b16 %v36
    %v140 = vunpack.c.h.b16 %v36
    %v141 = vunpack.c.l.b16 %v37
    %v142 = vunpack.c.h.b16 %v37
    %v143 = vunpack.c.l.b16 %v38
    %v144 = vunpack.c.h.b16 %v38
    %v145 = vunpack.c.l.b16 %v39
    %v146 = vunpack.c.h.b16 %v39
    %v147 = vunpack.c.l.b16 %v40
    %v148 = vunpack.c.h.b16 %v40
    %v149 = vunpack.c.l.b16 %v41
    %v150 = vunpack.c.h.b16 %v41
    %v151 = vunpack.c.l.b16 %v42
    %v152 = vunpack.c.h.b16 %v42
    %v153 = vunpack.c.l.b16 %v43
    %v154 = vunpack.c.h.b16 %v43
    %v155 = vunpack.c.l.b16 %v44
    %v156 = vunpack.c.h.b16 %v44
    %v157 = vunpack.c.l.b16 %v45
    %v158 = vunpack.c.h.b16 %v45
    %v159 = vunpack.c.l.b16 %v46
    %v160 = vunpack.c.h.b16 %v46
    %v161 = vunpack.c.l.b16 %v47
    %v162 = vunpack.c.h.b16 %v47
    %v163 = vunpack.c.l.b16 %v48
    %v164 = vunpack.c.h.b16 %v48
    %v165 = vunpack.c.l.b16 %v49
    %v166 = vunpack.c.h.b16 %v49
    %v167 = vunpack.c.l.b16 %v50
    %v168 = vunpack.c.h.b16 %v50
    %v169 = vunpack.c.l.b16 %v51
    %v170 = vunpack.c.h.b16 %v51
    %v171 = vunpack.c.l.b16 %v52
    %v172 = vunpack.c.h.b16 %v52
    %v173 = vunpack.c.l.b16 %v53
    %v174 = vunpack.c.h.b16 %v53
    %v175 = vunpack.c.l.b16 %v54
    %v176 = vunpack.c.h.b16 %v54
    %v177 = vunpack.c.l.b16 %v55
    %v178 = vunpack.c.h.b16 %v55
    %v179 = vunpack.c.l.b16 %v56
    %v180 = vunpack.c.h.b16 %v56
    %v181 = vunpack.c.l.b16 %v57
    %v182 = vunpack.c.h.b16 %v57
    %v183 = vunpack.c.l.b16 %v58
    %v184 = vunpack.c.h.b16 %v58
    %v185 = vunpack.c.l.b16 %v59
    %v186 = vunpack.c.h.b16 %v59
    %v187 = vunpack.c.l.b16 %v60
    %v188 = vunpack.c.h.b16 %v60
    %v189 = vunpack.c.l.b16 %v61
    %v190 = vunpack.c.h.b16 %v61
    %v191 = vunpack.c.l.b16 %v62
    %v192 = vunpack.c.h.b16 %v62
    %v193 = vunpack.c.l.b16 %v63
    %v194 = vunpack.c.h.b16 %v63
    %v195 = vunpack.c.l.b16 %v64
    %v196 = vunpack.c.h.b16 %v64
    %v197 = vunpack.c.l.b16 %v65
    %v198 = vunpack.c.h.b16 %v65
    %v199 = vunpack.c.l.b16 %v66
    %v200 = vunpack.c.h.b16 %v66
    %v201 = vunpack.c.l.b16 %v67
    %v202 = vunpack.c.h.b16 %v67
    %v203 = vunpack.c.l.b16 %v68
    %v204 = vunpack.c.h.b16 %v68
    %v205 = vunpack.c.l.b16 %v69
    %v206 = vunpack.c.h.b16 %v69
    %v207 = vunpack.c.l.b16 %v70
    %v208 = vunpack.c.h.b16 %v70
    %v209 = vunpack.c.l.b16 %v71
    %v210 = vunpack.c.h.b16 %v71
    %v211 = vunpack.c.l.b16 %v72
    %v212 = vunpack.c.h.b16 %v72
    %v213 = vunpack.c.l.b16 %v73
    %v214 = vunpack.c.h.b16 %v73
    %v215 = vunpack.c.l.b16 %v74
    %v216 = vunpack.c.h.b16 %v74
    %v217 = vunpack.c.l.b16 %v75
    %v218 = vunpack.c.h.b16 %v75
    %v219 = vpack.c.b16 %v139, %v137
    %v220 = vpack.c.b16 %v140, %v138
    %v221 = vpack.c.b16 %v143, %v141
    %v222 = vpack.c.b16 %v144, %v142
    %v223 = vpack.c.b16 %v147, %v145
    %v224 = vpack.c.b16 %v148, %v146
    %v225 = vpack.c.b16 %v151, %v149
    %v226 = vpack.c.b16 %v152, %v150
    %v227 = vpack.c.b16 %v155, %v153
    %v228 = vpack.c.b16 %v156, %v154
    %v229 = vpack.c.b16 %v159, %v157
    %v230 = vpack.c.b16 %v160, %v158
    %v231 = vpack.c.b16 %v163, %v161
    %v232 = vpack.c.b16 %v164, %v162
    %v233 = vpack.c.b16 %v167, %v165
    %v234 = vpack.c.b16 %v168, %v166
    %v235 = vpack.c.b16 %v171, %v169
    %v236 = vpack.c.b16 %v172, %v170
    %v237 = vpack.c.b16 %v175, %v173
    %v238 = vpack.c.b16 %v176, %v174
    %v239 = vpack.c.b16 %v179, %v177
    %v240 = vpack.c.b16 %v180, %v178
    %v241 = vpack.c.b16 %v183, %v181
    %v242 = vpack.c.b16 %v184, %v182
    %v243 = vpack.c.b16 %v187, %v185
    %v244 = vpack.c.b16 %v188, %v186
    %v245 = vpack.c.b16 %v191, %v189
    %v246 = vpack.c.b16 %v192, %v190
    %v247 = vpack.c.b16 %v195, %v193
    %v248 = vpack.c.b16 %v196, %v194
    %v249 = vpack.c.b16 %v199, %v197
    %v250 = vpack.c.b16 %v200, %v198
    %v251 = vpack.c.b16 %v203, %v201
    %v252 = vpack.c.b16 %v204, %v202
    %v253 = vpack.c.b16 %v207, %v205
    %v254 = vpack.c.b16 %v208, %v206
    %v255 = vpack.c.b16 %v211, %v209
    %v256 = vpack.c.b16 %v212, %v210
    %v257 = vpack.c.b16 %v215, %v213
    %v258 = vpack.c.b16 %v216, %v214
    %v259 = vpack.c.b16 %v217, %v217
    %v260 = vpack.c.b16 %v218, %v218
    %vm301 = vcmask 556032
    %v303 = vsel %vm301, %v93, 0
    %vm305 = vcmask 1041408
    %v307 = vsel %vm305, %v259, 0
    %v310 = vsel %vm305, %v260, 0
    %312 = vmatpush.bf16.msra.mxu0 %v233
    %313 = vmatpush.bf16.msra.mxu0 %v231
    %314 = vmatpush.bf16.msra.mxu0 %v229
    %315 = vmatpush.bf16.msra.mxu0 %v227
    %316 = vmatpush.bf16.msra.mxu0 %v225
    %317 = vmatpush.bf16.msra.mxu0 %v223
    %318 = vmatpush.bf16.msra.mxu0 %v221
    %319 = vmatpush.bf16.msra.mxu0 %v219
    %320 = vmatmul.bf16.gmra.mxu0 %v91
    %v321 = vpop.f32.mrf.mxu0
    %v322 = vadd.f32 %v77, %v321
    %v323 = vpop.f32.mrf.mxu0
    %v324 = vadd.f32 %v77, %v323
    %325 = vdwg.mxu0
    %326 = vmatpush.bf16.msra.mxu0 %v249
    %327 = vmatpush.bf16.msra.mxu0 %v247
    %328 = vmatpush.bf16.msra.mxu0 %v245
    %329 = vmatpush.bf16.msra.mxu0 %v243
    %330 = vmatpush.bf16.msra.mxu0 %v241
    %331 = vmatpush.bf16.msra.mxu0 %v239
    %332 = vmatpush.bf16.msra.mxu0 %v237
    %333 = vmatpush.bf16.msra.mxu0 %v235
    %334 = vmatmul.bf16.gmra.mxu0 %v92
    %v335 = vpop.f32.mrf.mxu0
    %v336 = vadd.f32 %v322, %v335
    %v337 = vpop.f32.mrf.mxu0
    %v338 = vadd.f32 %v324, %v337
    %339 = vdwg.mxu0
    %340 = vmatpush.bf16.msra.mxu0 0
    %341 = vmatpush.bf16.msra.mxu0 0
    %342 = vmatpush.bf16.msra.mxu0 0
    %343 = vmatpush.bf16.msra.mxu0 %v307
    %344 = vmatpush.bf16.msra.mxu0 %v257
    %345 = vmatpush.bf16.msra.mxu0 %v255
    %346 = vmatpush.bf16.msra.mxu0 %v253
    %347 = vmatpush.bf16.msra.mxu0 %v251
    %348 = vmatmul.bf16.gmra.mxu0 %v303
    %v349 = vpop.f32.mrf.mxu0
    %v350 = vadd.f32 %v336, %v349
    %v351 = vpop.f32.mrf.mxu0
    %v352 = vadd.f32 %v338, %v351
    %353 = vdwg.mxu0
    %354 = vmatpush.bf16.msra.mxu0 %v234
    %355 = vmatpush.bf16.msra.mxu0 %v232
    %356 = vmatpush.bf16.msra.mxu0 %v230
    %357 = vmatpush.bf16.msra.mxu0 %v228
    %358 = vmatpush.bf16.msra.mxu0 %v226
    %359 = vmatpush.bf16.msra.mxu0 %v224
    %360 = vmatpush.bf16.msra.mxu0 %v222
    %361 = vmatpush.bf16.msra.mxu0 %v220
    %362 = vmatmul.bf16.gmra.mxu0 %v91
    %v363 = vpop.f32.mrf.mxu0
    %v364 = vadd.f32 %v78, %v363
    %v365 = vpop.f32.mrf.mxu0
    %v366 = vadd.f32 %v78, %v365
    %367 = vdwg.mxu0
    %368 = vmatpush.bf16.msra.mxu0 %v250
    %369 = vmatpush.bf16.msra.mxu0 %v248
    %370 = vmatpush.bf16.msra.mxu0 %v246
    %371 = vmatpush.bf16.msra.mxu0 %v244
    %372 = vmatpush.bf16.msra.mxu0 %v242
    %373 = vmatpush.bf16.msra.mxu0 %v240
    %374 = vmatpush.bf16.msra.mxu0 %v238
    %375 = vmatpush.bf16.msra.mxu0 %v236
    %376 = vmatmul.bf16.gmra.mxu0 %v92
    %v377 = vpop.f32.mrf.mxu0
    %v378 = vadd.f32 %v364, %v377
    %v379 = vpop.f32.mrf.mxu0
    %v380 = vadd.f32 %v366, %v379
    %381 = vdwg.mxu0
    %382 = vmatpush.bf16.msra.mxu0 0
    %383 = vmatpush.bf16.msra.mxu0 0
    %384 = vmatpush.bf16.msra.mxu0 0
    %385 = vmatpush.bf16.msra.mxu0 %v310
    %386 = vmatpush.bf16.msra.mxu0 %v258
    %387 = vmatpush.bf16.msra.mxu0 %v256
    %388 = vmatpush.bf16.msra.mxu0 %v254
    %389 = vmatpush.bf16.msra.mxu0 %v252
    %390 = vmatmul.bf16.gmra.mxu0 %v303
    %v391 = vpop.f32.mrf.mxu0
    %v392 = vadd.f32 %v378, %v391
    %v393 = vpop.f32.mrf.mxu0
    %v394 = vadd.f32 %v380, %v393
    %395 = vdwg.mxu0
    %v396 = vadd.f32 %v350, %v392
    %397 = vadd.xlane.f32.xlu0 %v396
    %v398 = vpop.xlane.xlu0 %397
    %v399 = vadd.f32 %v352, %v394
    %400 = vadd.xlane.f32.xlu0 %v399
    %v401 = vpop.xlane.xlu0 %400
    %v402 = vrcp.pop 256.0
    %v403 = vmul.f32 256.0, %v402
    %v404 = vsub.f32 1.0, %v403
    %v405 = vmul.f32 %v402, %v404
    %v406 = vadd.f32 %v402, %v405
    %vm407 = vweird.f32 %v402
    %v408 = vsel %vm407, %v402, %v406
    %v409 = vmul.f32 %v398, %v408
    %v410 = vmul.f32 %v401, %v408
    %v411 = vsub.f32 %v350, %v409
    %v412 = vsub.f32 %v392, %v409
    %v413 = vsub.f32 %v352, %v410
    %v414 = vsub.f32 %v394, %v410
    %v415 = vmul.f32 %v411, %v411
    %v416 = vmul.f32 %v412, %v412
    %v417 = vmul.f32 %v413, %v413
    %v418 = vmul.f32 %v414, %v414
    %v419 = vadd.f32 %v415, %v416
    %420 = vadd.xlane.f32.xlu0 %v419
    %v421 = vpop.xlane.xlu0 %420
    %v422 = vadd.f32 %v417, %v418
    %423 = vadd.xlane.f32.xlu0 %v422
    %v424 = vpop.xlane.xlu0 %423
    %v425 = vmul.f32 %v421, %v408
    %v426 = vmul.f32 %v424, %v408
    %v427 = vadd.f32 %v425, 1e-05
    %v428 = vadd.f32 %v426, 1e-05
    %v429 = vrsqrt.pop %v427
    %v430 = vmul.f32 %v429, %v427
    %v431 = vmul.f32 %v430, %v429
    %v432 = vmul.f32 0.5, %v431
    %v433 = vsub.f32 1.5, %v432
    %v434 = vmul.f32 %v429, %v433
    %vm435 = vweird.f32 %v427
    %vm436 = vweird.f32 %v429
    %vm437 = vmor %vm435, %vm436
    %v438 = vsel %vm437, %v429, %v434
    %v439 = vrsqrt.pop %v428
    %v440 = vmul.f32 %v439, %v428
    %v441 = vmul.f32 %v440, %v439
    %v442 = vmul.f32 0.5, %v441
    %v443 = vsub.f32 1.5, %v442
    %v444 = vmul.f32 %v439, %v443
    %vm445 = vweird.f32 %v428
    %vm446 = vweird.f32 %v439
    %vm447 = vmor %vm445, %vm446
    %v448 = vsel %vm447, %v439, %v444
    %v449 = vmul.f32 %v411, %v438
    %v450 = vmul.f32 %v412, %v438
    %v451 = vmul.f32 %v413, %v448
    %v452 = vmul.f32 %v414, %v448
    %v453 = vmul.f32 %v449, 0.5
    %v454 = vmul.f32 %v450, 0.5
    %v455 = vmul.f32 %v451, 0.5
    %v456 = vmul.f32 %v452, 0.5
    %v457 = vmul.f32 %v449, 0.70710677
    %v458 = vmul.f32 %v450, 0.70710677
    %v459 = vmul.f32 %v451, 0.70710677
    %v460 = vmul.f32 %v452, 0.70710677
    %v461 = vmul.f32 %v457, %v457
    %v462 = vmin.f32 16.0, %v461
    %v463 = vmul.f32 %v462, 2.1237322e-06
    %v464 = vadd.f32 %v463, 0.00028619796
    %v465 = vmul.f32 %v462, %v464
    %v466 = vadd.f32 %v465, 0.0036580483
    %v467 = vmul.f32 %v462, %v466
    %v468 = vadd.f32 %v467, 0.05243302
    %v469 = vmul.f32 %v462, %v468
    %v470 = vadd.f32 %v469, 0.18741608
    %v471 = vmul.f32 %v462, %v470
    %v472 = vadd.f32 %v471, 1.1283791
    %v473 = vmul.f32 %v457, %v472
    %v474 = vmul.f32 %v462, 3.8918573e-05
    %v475 = vadd.f32 %v474, 0.001143296
    %v476 = vmul.f32 %v462, %v475
    %v477 = vadd.f32 %v476, 0.014752088
    %v478 = vmul.f32 %v462, %v477
    %v479 = vadd.f32 %v478, 0.112945676
    %v480 = vmul.f32 %v462, %v479
    %v481 = vadd.f32 %v480, 0.4994258
    %v482 = vmul.f32 %v462, %v481
    %v483 = vadd.f32 %v482, 1.0
    %v484 = vrcp.pop %v483
    %v485 = vmul.f32 %v483, %v484
    %v486 = vsub.f32 1.0, %v485
    %v487 = vmul.f32 %v484, %v486
    %v488 = vadd.f32 %v484, %v487
    %vm489 = vweird.f32 %v483
    %vm490 = vweird.f32 %v484
    %vm491 = vmor %vm489, %vm490
    %v492 = vsel %vm491, %v484, %v488
    %v493 = vand.u32 2147483647, %v483
    %vm494 = vcmp.eq.f32.partialorder %v493, 8.507059e+37
    %v495 = vand.u32 %v483, 2147483648
    %v496 = vor.u32 1.1754944e-38, %v495
    %v497 = vsel %vm494, %v496, %v492
    %v498 = vmul.f32 %v473, %v497
    %v499 = vmin.f32 %v498, 1.0
    %v500 = vmax.f32 %v499, -1.0
    %v501 = vmul.f32 %v458, %v458
    %v502 = vmin.f32 16.0, %v501
    %v503 = vmul.f32 %v502, 2.1237322e-06
    %v504 = vadd.f32 %v503, 0.00028619796
    %v505 = vmul.f32 %v502, %v504
    %v506 = vadd.f32 %v505, 0.0036580483
    %v507 = vmul.f32 %v502, %v506
    %v508 = vadd.f32 %v507, 0.05243302
    %v509 = vmul.f32 %v502, %v508
    %v510 = vadd.f32 %v509, 0.18741608
    %v511 = vmul.f32 %v502, %v510
    %v512 = vadd.f32 %v511, 1.1283791
    %v513 = vmul.f32 %v458, %v512
    %v514 = vmul.f32 %v502, 3.8918573e-05
    %v515 = vadd.f32 %v514, 0.001143296
    %v516 = vmul.f32 %v502, %v515
    %v517 = vadd.f32 %v516, 0.014752088
    %v518 = vmul.f32 %v502, %v517
    %v519 = vadd.f32 %v518, 0.112945676
    %v520 = vmul.f32 %v502, %v519
    %v521 = vadd.f32 %v520, 0.4994258
    %v522 = vmul.f32 %v502, %v521
    %v523 = vadd.f32 %v522, 1.0
    %v524 = vrcp.pop %v523
    %v525 = vmul.f32 %v523, %v524
    %v526 = vsub.f32 1.0, %v525
    %v527 = vmul.f32 %v524, %v526
    %v528 = vadd.f32 %v524, %v527
    %vm529 = vweird.f32 %v523
    %vm530 = vweird.f32 %v524
    %vm531 = vmor %vm529, %vm530
    %v532 = vsel %vm531, %v524, %v528
    %v533 = vand.u32 2147483647, %v523
    %vm534 = vcmp.eq.f32.partialorder %v533, 8.507059e+37
    %v535 = vand.u32 %v523, 2147483648
    %v536 = vor.u32 1.1754944e-38, %v535
    %v537 = vsel %vm534, %v536, %v532
    %v538 = vmul.f32 %v513, %v537
    %v539 = vmin.f32 %v538, 1.0
    %v540 = vmax.f32 %v539, -1.0
    %v541 = vmul.f32 %v459, %v459
    %v542 = vmin.f32 16.0, %v541
    %v543 = vmul.f32 %v542, 2.1237322e-06
    %v544 = vadd.f32 %v543, 0.00028619796
    %v545 = vmul.f32 %v542, %v544
    %v546 = vadd.f32 %v545, 0.0036580483
    %v547 = vmul.f32 %v542, %v546
    %v548 = vadd.f32 %v547, 0.05243302
    %v549 = vmul.f32 %v542, %v548
    %v550 = vadd.f32 %v549, 0.18741608
    %v551 = vmul.f32 %v542, %v550
    %v552 = vadd.f32 %v551, 1.1283791
    %v553 = vmul.f32 %v459, %v552
    %v554 = vmul.f32 %v542, 3.8918573e-05
    %v555 = vadd.f32 %v554, 0.001143296
    %v556 = vmul.f32 %v542, %v555
    %v557 = vadd.f32 %v556, 0.014752088
    %v558 = vmul.f32 %v542, %v557
    %v559 = vadd.f32 %v558, 0.112945676
    %v560 = vmul.f32 %v542, %v559
    %v561 = vadd.f32 %v560, 0.4994258
    %v562 = vmul.f32 %v542, %v561
    %v563 = vadd.f32 %v562, 1.0
    %v564 = vrcp.pop %v563
    %v565 = vmul.f32 %v563, %v564
    %v566 = vsub.f32 1.0, %v565
    %v567 = vmul.f32 %v564, %v566
    %v568 = vadd.f32 %v564, %v567
    %vm569 = vweird.f32 %v563
    %vm570 = vweird.f32 %v564
    %vm571 = vmor %vm569, %vm570
    %v572 = vsel %vm571, %v564, %v568
    %v573 = vand.u32 2147483647, %v563
    %vm574 = vcmp.eq.f32.partialorder %v573, 8.507059e+37
    %v575 = vand.u32 %v563, 2147483648
    %v576 = vor.u32 1.1754944e-38, %v575
    %v577 = vsel %vm574, %v576, %v572
    %v578 = vmul.f32 %v553, %v577
    %v579 = vmin.f32 %v578, 1.0
    %v580 = vmax.f32 %v579, -1.0
    %v581 = vmul.f32 %v460, %v460
    %v582 = vmin.f32 16.0, %v581
    %v583 = vmul.f32 %v582, 2.1237322e-06
    %v584 = vadd.f32 %v583, 0.00028619796
    %v585 = vmul.f32 %v582, %v584
    %v586 = vadd.f32 %v585, 0.0036580483
    %v587 = vmul.f32 %v582, %v586
    %v588 = vadd.f32 %v587, 0.05243302
    %v589 = vmul.f32 %v582, %v588
    %v590 = vadd.f32 %v589, 0.18741608
    %v591 = vmul.f32 %v582, %v590
    %v592 = vadd.f32 %v591, 1.1283791
    %v593 = vmul.f32 %v460, %v592
    %v594 = vmul.f32 %v582, 3.8918573e-05
    %v595 = vadd.f32 %v594, 0.001143296
    %v596 = vmul.f32 %v582, %v595
    %v597 = vadd.f32 %v596, 0.014752088
    %v598 = vmul.f32 %v582, %v597
    %v599 = vadd.f32 %v598, 0.112945676
    %v600 = vmul.f32 %v582, %v599
    %v601 = vadd.f32 %v600, 0.4994258
    %v602 = vmul.f32 %v582, %v601
    %v603 = vadd.f32 %v602, 1.0
    %v604 = vrcp.pop %v603
    %v605 = vmul.f32 %v603, %v604
    %v606 = vsub.f32 1.0, %v605
    %v607 = vmul.f32 %v604, %v606
    %v608 = vadd.f32 %v604, %v607
    %vm609 = vweird.f32 %v603
    %vm610 = vweird.f32 %v604
    %vm611 = vmor %vm609, %vm610
    %v612 = vsel %vm611, %v604, %v608
    %v613 = vand.u32 2147483647, %v603
    %vm614 = vcmp.eq.f32.partialorder %v613, 8.507059e+37
    %v615 = vand.u32 %v603, 2147483648
    %v616 = vor.u32 1.1754944e-38, %v615
    %v617 = vsel %vm614, %v616, %v612
    %v618 = vmul.f32 %v593, %v617
    %v619 = vmin.f32 %v618, 1.0
    %v620 = vmax.f32 %v619, -1.0
    %v621 = vadd.f32 %v500, 1.0
    %v622 = vadd.f32 %v540, 1.0
    %v623 = vadd.f32 %v580, 1.0
    %v624 = vadd.f32 %v620, 1.0
    %v625 = vmul.f32 %v453, %v621
    %v626 = vmul.f32 %v454, %v622
    %v627 = vmul.f32 %v455, %v623
    %v628 = vmul.f32 %v456, %v624
    %v629 = vld [vmem:[%s3] sm:$0xf]
    %v630 = vld [vmem:[%s3 + $0x4] sm:$0xf]
    %v631 = vld [vmem:[%s3 + $0x8] sm:$0xf]
    %v632 = vld [vmem:[%s3 + $0xc] sm:$0xf]
    %v633 = vld [vmem:[%s3 + $0x10] sm:$0xf]
    %v634 = vld [vmem:[%s3 + $0x14] sm:$0xf]
    %v635 = vld [vmem:[%s3 + $0x18] sm:$0xf]
    %v636 = vld [vmem:[%s3 + $0x1c] sm:$0xf]
    %v637 = vld [vmem:[%s3 + $0x20] sm:$0xf]
    %v638 = vld [vmem:[%s3 + $0x24] sm:$0xf]
    %v639 = vld [vmem:[%s3 + $0x28] sm:$0xf]
    %v640 = vld [vmem:[%s3 + $0x2c] sm:$0xf]
    %v641 = vld [vmem:[%s3 + $0x30] sm:$0xf]
    %v642 = vld [vmem:[%s3 + $0x34] sm:$0xf]
    %v643 = vld [vmem:[%s3 + $0x38] sm:$0xf]
    %v644 = vld [vmem:[%s3 + $0x3c] sm:$0xf]
    %v645 = vld [vmem:[%s3 + $0x40] sm:$0xf]
    %v646 = vld [vmem:[%s3 + $0x44] sm:$0xf]
    %v647 = vld [vmem:[%s3 + $0x48] sm:$0xf]
    %v648 = vld [vmem:[%s3 + $0x4c] sm:$0xf]
    %v649 = vld [vmem:[%s3 + $0x50] sm:$0xf]
    %v650 = vld [vmem:[%s3 + $0x54] sm:$0xf]
    %v651 = vld [vmem:[%s3 + $0x58] sm:$0xf]
    %v652 = vld [vmem:[%s3 + $0x5c] sm:$0xf]
    %v653 = vld [vmem:[%s3 + $0x60] sm:$0xf]
    %v654 = vld [vmem:[%s3 + $0x64] sm:$0xf]
    %v655 = vld [vmem:[%s3 + $0x68] sm:$0xf]
    %v656 = vld [vmem:[%s3 + $0x6c] sm:$0xf]
    %v657 = vld [vmem:[%s3 + $0x70] sm:$0xf]
    %v658 = vld [vmem:[%s3 + $0x74] sm:$0xf]
    %v659 = vld [vmem:[%s3 + $0x78] sm:$0xf]
    %v660 = vld [vmem:[%s3 + $0x7c] sm:$0xf]
    %v661 = vpack.c.bf16 %v627, %v625
    %v662 = vpack.c.bf16 %v628, %v626
    %v664 = vperm.slane %v29, 0
    %v698 = vunpack.c.l.b16 %v629
    %v699 = vunpack.c.l.b16 %v630
    %v700 = vunpack.c.l.b16 %v631
    %v701 = vunpack.c.l.b16 %v632
    %v702 = vunpack.c.l.b16 %v633
    %v703 = vunpack.c.l.b16 %v634
    %v704 = vunpack.c.l.b16 %v635
    %v705 = vunpack.c.l.b16 %v636
    %v706 = vunpack.c.l.b16 %v637
    %v707 = vunpack.c.l.b16 %v638
    %v708 = vunpack.c.l.b16 %v639
    %v709 = vunpack.c.l.b16 %v640
    %v710 = vunpack.c.l.b16 %v641
    %v711 = vunpack.c.l.b16 %v642
    %v712 = vunpack.c.l.b16 %v643
    %v713 = vunpack.c.l.b16 %v644
    %v714 = vunpack.c.l.b16 %v645
    %v715 = vunpack.c.l.b16 %v646
    %v716 = vunpack.c.l.b16 %v647
    %v717 = vunpack.c.l.b16 %v648
    %v718 = vunpack.c.l.b16 %v649
    %v719 = vunpack.c.l.b16 %v650
    %v720 = vunpack.c.l.b16 %v651
    %v721 = vunpack.c.l.b16 %v652
    %v722 = vunpack.c.l.b16 %v653
    %v723 = vunpack.c.l.b16 %v654
    %v724 = vunpack.c.l.b16 %v655
    %v725 = vunpack.c.l.b16 %v656
    %v726 = vunpack.c.l.b16 %v657
    %v727 = vunpack.c.l.b16 %v658
    %v728 = vunpack.c.l.b16 %v659
    %v729 = vunpack.c.l.b16 %v660
    %v730 = vpack.c.b16 %v699, %v698
    %v731 = vpack.c.b16 %v701, %v700
    %v732 = vpack.c.b16 %v703, %v702
    %v733 = vpack.c.b16 %v705, %v704
    %v734 = vpack.c.b16 %v707, %v706
    %v735 = vpack.c.b16 %v709, %v708
    %v736 = vpack.c.b16 %v711, %v710
    %v737 = vpack.c.b16 %v713, %v712
    %v738 = vpack.c.b16 %v715, %v714
    %v739 = vpack.c.b16 %v717, %v716
    %v740 = vpack.c.b16 %v719, %v718
    %v741 = vpack.c.b16 %v721, %v720
    %v742 = vpack.c.b16 %v723, %v722
    %v743 = vpack.c.b16 %v725, %v724
    %v744 = vpack.c.b16 %v727, %v726
    %v745 = vpack.c.b16 %v729, %v728
    %762 = vmatpush.bf16.msra.mxu0 %v737
    %763 = vmatpush.bf16.msra.mxu0 %v736
    %764 = vmatpush.bf16.msra.mxu0 %v735
    %765 = vmatpush.bf16.msra.mxu0 %v734
    %766 = vmatpush.bf16.msra.mxu0 %v733
    %767 = vmatpush.bf16.msra.mxu0 %v732
    %768 = vmatpush.bf16.msra.mxu0 %v731
    %769 = vmatpush.bf16.msra.mxu0 %v730
    %770 = vmatmul.bf16.gmra.mxu0 %v661
    %v771 = vpop.f32.mrf.mxu0
    %v772 = vadd.f32 %v664, %v771
    %v773 = vpop.f32.mrf.mxu0
    %v774 = vadd.f32 %v664, %v773
    %775 = vdwg.mxu0
    %776 = vmatpush.bf16.msra.mxu0 %v745
    %777 = vmatpush.bf16.msra.mxu0 %v744
    %778 = vmatpush.bf16.msra.mxu0 %v743
    %779 = vmatpush.bf16.msra.mxu0 %v742
    %780 = vmatpush.bf16.msra.mxu0 %v741
    %781 = vmatpush.bf16.msra.mxu0 %v740
    %782 = vmatpush.bf16.msra.mxu0 %v739
    %783 = vmatpush.bf16.msra.mxu0 %v738
    %784 = vmatmul.bf16.gmra.mxu0 %v662
    %v785 = vpop.f32.mrf.mxu0
    %v786 = vadd.f32 %v772, %v785
    %v787 = vpop.f32.mrf.mxu0
    %v788 = vadd.f32 %v774, %v787
    %789 = vdwg.mxu0
    %790 = vadd.xlane.f32.xlu0 %v786
    %v791 = vpop.xlane.xlu0 %790
    %792 = vadd.xlane.f32.xlu0 %v788
    %v793 = vpop.xlane.xlu0 %792
    %v794 = vrcp.pop 128.0
    %v795 = vmul.f32 128.0, %v794
    %v796 = vsub.f32 1.0, %v795
    %v797 = vmul.f32 %v794, %v796
    %v798 = vadd.f32 %v794, %v797
    %vm799 = vweird.f32 %v794
    %v800 = vsel %vm799, %v794, %v798
    %v801 = vmul.f32 %v791, %v800
    %v802 = vmul.f32 %v793, %v800
    %v803 = vsub.f32 %v786, %v801
    %v804 = vsub.f32 %v788, %v802
    %v805 = vmul.f32 %v803, %v803
    %v806 = vmul.f32 %v804, %v804
    %807 = vadd.xlane.f32.xlu0 %v805
    %v808 = vpop.xlane.xlu0 %807
    %809 = vadd.xlane.f32.xlu0 %v806
    %v810 = vpop.xlane.xlu0 %809
    %v811 = vmul.f32 %v808, %v800
    %v812 = vmul.f32 %v810, %v800
    %v813 = vadd.f32 %v811, 1e-05
    %v814 = vadd.f32 %v812, 1e-05
    %v815 = vrsqrt.pop %v813
    %v816 = vmul.f32 %v815, %v813
    %v817 = vmul.f32 %v816, %v815
    %v818 = vmul.f32 0.5, %v817
    %v819 = vsub.f32 1.5, %v818
    %v820 = vmul.f32 %v815, %v819
    %vm821 = vweird.f32 %v813
    %vm822 = vweird.f32 %v815
    %vm823 = vmor %vm821, %vm822
    %v824 = vsel %vm823, %v815, %v820
    %v825 = vrsqrt.pop %v814
    %v826 = vmul.f32 %v825, %v814
    %v827 = vmul.f32 %v826, %v825
    %v828 = vmul.f32 0.5, %v827
    %v829 = vsub.f32 1.5, %v828
    %v830 = vmul.f32 %v825, %v829
    %vm831 = vweird.f32 %v814
    %vm832 = vweird.f32 %v825
    %vm833 = vmor %vm831, %vm832
    %v834 = vsel %vm833, %v825, %v830
    %v835 = vmul.f32 %v803, %v824
    %v836 = vmul.f32 %v804, %v834
    %v837 = vmul.f32 %v835, 0.5
    %v838 = vmul.f32 %v836, 0.5
    %v839 = vmul.f32 %v835, 0.70710677
    %v840 = vmul.f32 %v836, 0.70710677
    %v841 = vmul.f32 %v839, %v839
    %v842 = vmin.f32 16.0, %v841
    %v843 = vmul.f32 %v842, 2.1237322e-06
    %v844 = vadd.f32 %v843, 0.00028619796
    %v845 = vmul.f32 %v842, %v844
    %v846 = vadd.f32 %v845, 0.0036580483
    %v847 = vmul.f32 %v842, %v846
    %v848 = vadd.f32 %v847, 0.05243302
    %v849 = vmul.f32 %v842, %v848
    %v850 = vadd.f32 %v849, 0.18741608
    %v851 = vmul.f32 %v842, %v850
    %v852 = vadd.f32 %v851, 1.1283791
    %v853 = vmul.f32 %v839, %v852
    %v854 = vmul.f32 %v842, 3.8918573e-05
    %v855 = vadd.f32 %v854, 0.001143296
    %v856 = vmul.f32 %v842, %v855
    %v857 = vadd.f32 %v856, 0.014752088
    %v858 = vmul.f32 %v842, %v857
    %v859 = vadd.f32 %v858, 0.112945676
    %v860 = vmul.f32 %v842, %v859
    %v861 = vadd.f32 %v860, 0.4994258
    %v862 = vmul.f32 %v842, %v861
    %v863 = vadd.f32 %v862, 1.0
    %v864 = vrcp.pop %v863
    %v865 = vmul.f32 %v863, %v864
    %v866 = vsub.f32 1.0, %v865
    %v867 = vmul.f32 %v864, %v866
    %v868 = vadd.f32 %v864, %v867
    %vm869 = vweird.f32 %v863
    %vm870 = vweird.f32 %v864
    %vm871 = vmor %vm869, %vm870
    %v872 = vsel %vm871, %v864, %v868
    %v873 = vand.u32 2147483647, %v863
    %vm874 = vcmp.eq.f32.partialorder %v873, 8.507059e+37
    %v875 = vand.u32 %v863, 2147483648
    %v876 = vor.u32 1.1754944e-38, %v875
    %v877 = vsel %vm874, %v876, %v872
    %v878 = vmul.f32 %v853, %v877
    %v879 = vmin.f32 %v878, 1.0
    %v880 = vmax.f32 %v879, -1.0
    %v881 = vmul.f32 %v840, %v840
    %v882 = vmin.f32 16.0, %v881
    %v883 = vmul.f32 %v882, 2.1237322e-06
    %v884 = vadd.f32 %v883, 0.00028619796
    %v885 = vmul.f32 %v882, %v884
    %v886 = vadd.f32 %v885, 0.0036580483
    %v887 = vmul.f32 %v882, %v886
    %v888 = vadd.f32 %v887, 0.05243302
    %v889 = vmul.f32 %v882, %v888
    %v890 = vadd.f32 %v889, 0.18741608
    %v891 = vmul.f32 %v882, %v890
    %v892 = vadd.f32 %v891, 1.1283791
    %v893 = vmul.f32 %v840, %v892
    %v894 = vmul.f32 %v882, 3.8918573e-05
    %v895 = vadd.f32 %v894, 0.001143296
    %v896 = vmul.f32 %v882, %v895
    %v897 = vadd.f32 %v896, 0.014752088
    %v898 = vmul.f32 %v882, %v897
    %v899 = vadd.f32 %v898, 0.112945676
    %v900 = vmul.f32 %v882, %v899
    %v901 = vadd.f32 %v900, 0.4994258
    %v902 = vmul.f32 %v882, %v901
    %v903 = vadd.f32 %v902, 1.0
    %v904 = vrcp.pop %v903
    %v905 = vmul.f32 %v903, %v904
    %v906 = vsub.f32 1.0, %v905
    %v907 = vmul.f32 %v904, %v906
    %v908 = vadd.f32 %v904, %v907
    %vm909 = vweird.f32 %v903
    %vm910 = vweird.f32 %v904
    %vm911 = vmor %vm909, %vm910
    %v912 = vsel %vm911, %v904, %v908
    %v913 = vand.u32 2147483647, %v903
    %vm914 = vcmp.eq.f32.partialorder %v913, 8.507059e+37
    %v915 = vand.u32 %v903, 2147483648
    %v916 = vor.u32 1.1754944e-38, %v915
    %v917 = vsel %vm914, %v916, %v912
    %v918 = vmul.f32 %v893, %v917
    %v919 = vmin.f32 %v918, 1.0
    %v920 = vmax.f32 %v919, -1.0
    %v921 = vadd.f32 %v880, 1.0
    %v922 = vadd.f32 %v920, 1.0
    %v923 = vmul.f32 %v837, %v921
    %v924 = vmul.f32 %v838, %v922
    %v925 = vld [vmem:[%s5] sm:$0xf]
    %v926 = vld [vmem:[%s5 + $0x4] sm:$0xf]
    %v927 = vld [vmem:[%s5 + $0x8] sm:$0xf]
    %v928 = vld [vmem:[%s5 + $0xc] sm:$0xf]
    %v929 = vld [vmem:[%s5 + $0x10] sm:$0xf]
    %v930 = vld [vmem:[%s5 + $0x14] sm:$0xf]
    %v931 = vld [vmem:[%s5 + $0x18] sm:$0xf]
    %v932 = vld [vmem:[%s5 + $0x1c] sm:$0xf]
    %v933 = vld [vmem:[%s5 + $0x20] sm:$0xf]
    %v934 = vld [vmem:[%s5 + $0x24] sm:$0xf]
    %v935 = vld [vmem:[%s5 + $0x28] sm:$0xf]
    %v936 = vld [vmem:[%s5 + $0x2c] sm:$0xf]
    %v937 = vld [vmem:[%s5 + $0x30] sm:$0xf]
    %v938 = vld [vmem:[%s5 + $0x34] sm:$0xf]
    %v939 = vld [vmem:[%s5 + $0x38] sm:$0xf]
    %v940 = vld [vmem:[%s5 + $0x3c] sm:$0xf]
    %v941 = vpack.c.bf16 %v924, %v923
    %v943 = vperm.slane %v30, 0
    %v961 = vunpack.c.l.b16 %v925
    %v962 = vunpack.c.l.b16 %v926
    %v963 = vunpack.c.l.b16 %v927
    %v964 = vunpack.c.l.b16 %v928
    %v965 = vunpack.c.l.b16 %v929
    %v966 = vunpack.c.l.b16 %v930
    %v967 = vunpack.c.l.b16 %v931
    %v968 = vunpack.c.l.b16 %v932
    %v969 = vunpack.c.l.b16 %v933
    %v970 = vunpack.c.l.b16 %v934
    %v971 = vunpack.c.l.b16 %v935
    %v972 = vunpack.c.l.b16 %v936
    %v973 = vunpack.c.l.b16 %v937
    %v974 = vunpack.c.l.b16 %v938
    %v975 = vunpack.c.l.b16 %v939
    %v976 = vunpack.c.l.b16 %v940
    %v977 = vpack.c.b16 %v962, %v961
    %v978 = vpack.c.b16 %v964, %v963
    %v979 = vpack.c.b16 %v966, %v965
    %v980 = vpack.c.b16 %v968, %v967
    %v981 = vpack.c.b16 %v970, %v969
    %v982 = vpack.c.b16 %v972, %v971
    %v983 = vpack.c.b16 %v974, %v973
    %v984 = vpack.c.b16 %v976, %v975
    %993 = vmatpush.bf16.msra.mxu0 %v984
    %994 = vmatpush.bf16.msra.mxu0 %v983
    %995 = vmatpush.bf16.msra.mxu0 %v982
    %996 = vmatpush.bf16.msra.mxu0 %v981
    %997 = vmatpush.bf16.msra.mxu0 %v980
    %998 = vmatpush.bf16.msra.mxu0 %v979
    %999 = vmatpush.bf16.msra.mxu0 %v978
    %1000 = vmatpush.bf16.msra.mxu0 %v977
    %1001 = vmatmul.bf16.gmra.mxu0 %v941
    %v1002 = vpop.f32.mrf.mxu0
    %v1003 = vadd.f32 %v943, %v1002
    %v1004 = vpop.f32.mrf.mxu0
    %v1005 = vadd.f32 %v943, %v1004
    %1006 = vdwg.mxu0
    %vm1007 = vcmask 523264
    %1008 = vst.msk [vmem:[#allocation2] sm:$0xff] %vm1007, %v1003
    %1009 = vst.msk [vmem:[#allocation2 + $0x8] sm:$0xff] %vm1007, %v1005
    // Predicated region
    $region30: #{mlp_forward.1} parent=1 // pred_check
      _
    $region31: #{mlp_forward.1} parent=1 // pred_check_branch
      %1011 = sbr.rel (0) target = $region33
    $region32: #{mlp_forward.1} parent=1 // pred_region
      %1013 = vsyncadd [#allocation3], 0
      %s1014 = sshll.u32 [#allocation2], 4
      %s1015 = int_to_ptr.vmem [resolvable:$true] %s1014
      %s1016 = sshll.u32 %s7, 4
      %s1017 = int_to_ptr.hbm [resolvable:$true] %s1016
      %1022 = dma.vmem_to_hbm [thread:$0]  %s1015, 256, %s1017, [#allocation3], 128, 128, 8
    $region33: #{mlp_forward.1} parent=1 // pred_fallthru
      _
    // Predicated region
    $region34: #{mlp_forward.1} parent=1 // pred_check
      _
    $region35: #{mlp_forward.1} parent=1 // pred_check_branch
      %1024 = sbr.rel (0) target = $region37
    $region36: #{mlp_forward.1} parent=1 // pred_region
      %1026 = dma.done [#allocation3], 256
    $region37: #{mlp_forward.1} parent=1 // pred_fallthru
      _
    %1027 = vsyncpa [#allocation3], 1

</llo_original>
